<compile_context>
chip_gen: v7x
topology: tpu7x:2x2x1
jax: 0.10.0
libtpu: 0.0.40
codegen_flags: <defaults>
</compile_context>

<pallas_src>
import functools

import jax
import jax.numpy as jnp
from jax.experimental import pallas as pl
from jax.experimental.pallas import tpu as pltpu

LEAKY_ALPHA = 0.2          # self.alpha (LeakyReLU negative slope)
MASK_FILL = -9.0e15        # -9000000000000000.0 in the reference
LANE = 128


def _round_up(x, m):
    return ((x + m - 1) // m) * m


def _gat_kernel(ex_ref, adj_ref, f1_ref, f2_ref, kcw_ref, e_ref, out_ref):
    # Attention logits from the two hoisted rank-1 factors (full f32 precision):
    #   e[i, j] = f1[i] + f2[j]  with  f1 = ex_h @ (W1 @ a1),  f2 = kc_Wh @ a2
    logits = f1_ref[...] + f2_ref[0:1, :]                    # (tile_m, N_kc_pad)
    logits = jnp.where(logits > 0, logits, LEAKY_ALPHA * logits)   # LeakyReLU

    # Adjacency mask (int8; padded KC columns are 0 so they are masked out)
    # followed by a numerically stable row softmax (dim=1).
    mask = adj_ref[...].astype(jnp.int32) > 0
    att = jnp.where(mask, logits, MASK_FILL)
    att = att - jnp.max(att, axis=1, keepdims=True)
    p = jnp.exp(att)
    att = p * pl.reciprocal(jnp.sum(p, axis=1, keepdims=True), approx=True)

    # Aggregate the precomputed kc_Wh and apply the mode==2 elementwise gate.
    # bf16 MXU inputs, f32 accumulation.
    new_kc = jnp.dot(att.astype(jnp.bfloat16), kcw_ref[...],
                     preferred_element_type=jnp.float32)      # (tile_m, F_out_pad)
    ex_Eh = jnp.dot(ex_ref[...], e_ref[...],
                    preferred_element_type=jnp.float32)       # (tile_m, F_out_pad)
    emb = new_kc * ex_Eh

    # F.elu (alpha = 1).  Clamp the exp argument so the discarded positive
    # branch never overflows.
    neg = jnp.exp(jnp.minimum(emb, 0.0)) - 1.0
    out_ref[...] = jnp.where(emb > 0, emb, neg).astype(out_ref.dtype)


@jax.jit
def exercise_kc_gat(exercise_h, kc_h, adj, W1, E, a):
    """Pallas forward for Exercise_KC_GraphAttentionLayer (mode=2, concat=True)."""
    exercise_h = exercise_h.astype(jnp.float32)
    kc_h = kc_h.astype(jnp.float32)
    W1 = W1.astype(jnp.float32)
    E = E.astype(jnp.float32)
    a = a.astype(jnp.float32)

    n_ex, f_in = exercise_h.shape
    n_kc = kc_h.shape[0]
    f_out = W1.shape[1]

    f_in_pad = _round_up(f_in, LANE)
    f_out_pad = _round_up(f_out, LANE)
    n_kc_pad = _round_up(n_kc, LANE)

    # Row tile: multiple of 32 (int8 adj sublane tiling), up to 256.  If the
    # grid would have a single step, split it so both TensorCores (v7x) get work.
    tile_m = min(256, _round_up(n_ex, 32))
    n_ex_pad = _round_up(n_ex, tile_m)
    if n_ex_pad // tile_m == 1 and tile_m >= 64:
        tile_m = _round_up(tile_m // 2, 32)
        n_ex_pad = _round_up(n_ex, tile_m)

    # ---- Hoisted constant work: once per call, NOT once per grid step --------
    a1 = a[:f_out, 0]
    a2 = a[f_out:, 0]
    wa1 = W1 @ a1                                   # (f_in,)
    kc_Wh = kc_h @ W1                               # (n_kc, f_out)
    f1 = exercise_h @ wa1                           # (n_ex,)  == ex_Wh @ a1
    f2 = kc_Wh @ a2                                 # (n_kc,)

    def pad2(x, rows, cols):
        r, c = x.shape
        return jnp.pad(x, ((0, rows - r), (0, cols - c)))

    ex_p = pad2(exercise_h, n_ex_pad, f_in_pad).astype(jnp.bfloat16)
    adj_p = pad2((adj > 0).astype(jnp.int8), n_ex_pad, n_kc_pad)
    f1_p = jnp.zeros((n_ex_pad, 1), jnp.float32).at[:n_ex, 0].set(f1)
    f2_p = jnp.zeros((8, n_kc_pad), jnp.float32).at[0, :n_kc].set(f2)
    kcw_p = pad2(kc_Wh, n_kc_pad, f_out_pad).astype(jnp.bfloat16)
    e_p = pad2(E, f_in_pad, f_out_pad).astype(jnp.bfloat16)

    # VMEM budget (double-buffered blocks + headroom), capped for v7x's 64 MiB.
    streamed = (tile_m * f_in_pad * 2 + tile_m * n_kc_pad * 1
                + tile_m * 4 + tile_m * f_out_pad * 4)
    resident = 8 * n_kc_pad * 4 + n_kc_pad * f_out_pad * 2 + f_in_pad * f_out_pad * 2
    vmem_limit = int(min(64 * 2**20,
                         max(32 * 2**20, 3 * (2 * streamed + 2 * resident))))

    grid = (n_ex_pad // tile_m,)
    out = pl.pallas_call(
        _gat_kernel,
        out_shape=jax.ShapeDtypeStruct((n_ex_pad, f_out_pad), jnp.float32),
        grid_spec=pltpu.PrefetchScalarGridSpec(
            num_scalar_prefetch=0,
            grid=grid,
            in_specs=[
                pl.BlockSpec((tile_m, f_in_pad), lambda i: (i, 0)),    # exercise rows (bf16)
                pl.BlockSpec((tile_m, n_kc_pad), lambda i: (i, 0)),    # adjacency rows (int8)
                pl.BlockSpec((tile_m, 1), lambda i: (i, 0)),           # f1 column (f32)
                pl.BlockSpec((8, n_kc_pad), lambda i: (0, 0)),         # f2 row (f32, resident)
                pl.BlockSpec((n_kc_pad, f_out_pad), lambda i: (0, 0)), # kc_Wh (bf16, resident)
                pl.BlockSpec((f_in_pad, f_out_pad), lambda i: (0, 0)), # E (bf16, resident)
            ],
            out_specs=pl.BlockSpec((tile_m, f_out_pad), lambda i: (i, 0)),
        ),
        compiler_params=pltpu.CompilerParams(
            dimension_semantics=("parallel",),
            vmem_limit_bytes=vmem_limit),
    )(ex_p, adj_p, f1_p, f2_p, kcw_p, e_p)

    return out[:n_ex, :f_out]


def _reference(exercise_h, kc_h, adj, W1, E, a):
    """Pure-JAX f32 reference matching the PyTorch forward (mode=2, concat=True)."""
    f_out = W1.shape[1]
    kc_Wh = kc_h @ W1
    ex_Wh = exercise_h @ W1
    e = ex_Wh @ a[:f_out] + (kc_Wh @ a[f_out:]).T
    e = jnp.where(e > 0, e, LEAKY_ALPHA * e)
    att = jnp.where(adj > 0, e, MASK_FILL)
    att = jax.nn.softmax(att, axis=1)
    emb = (att @ kc_Wh) * (exercise_h @ E)
    return jnp.where(emb > 0, emb, jnp.exp(jnp.minimum(emb, 0.0)) - 1.0)


def _kaiming_normal(key, shape):
    # kaiming_normal_ (fan_in mode, ReLU gain): std = sqrt(2 / fan_in)
    fan_in = shape[0]
    return jax.random.normal(key, shape, dtype=jnp.float32) * jnp.sqrt(2.0 / fan_in)


def _make_case(key, n_ex, n_kc, f_in, f_out):
    k_ex, k_kc, k_adj, k_w1, k_e, k_a = jax.random.split(key, 6)
    exercise_h = jax.random.normal(k_ex, (n_ex, f_in), dtype=jnp.float32)
    kc_h = jax.random.normal(k_kc, (n_kc, f_in), dtype=jnp.float32)
    adj = (jax.random.uniform(k_adj, (n_ex, n_kc)) > 0.5).astype(jnp.float32)
    # Guarantee every exercise has at least one neighbor (avoid the fully-masked
    # softmax degenerate case, same caveat as the PyTorch reference).
    adj = adj.at[:, 0].set(1.0)
    W1 = _kaiming_normal(k_w1, (f_in, f_out))
    E = _kaiming_normal(k_e, (f_in, f_out))
    a = _kaiming_normal(k_a, (2 * f_out, 1))
    return exercise_h, kc_h, adj, W1, E, a


if __name__ == "__main__":
    key = jax.random.PRNGKey(0)
    k_small, k_big = jax.random.split(key)

    # Small, module-consistent shapes (single grid step).
    cases = [
        (_make_case(k_small, 16, 16, 32, 32), (16, 32)),
        # Multi-tile grid + ragged padding + v7x tile-split path.
        (_make_case(k_big, 200, 150, 48, 96), (200, 96)),
    ]

    for (exercise_h, kc_h, adj, W1, E, a), out_shape in cases:
        out = exercise_kc_gat(exercise_h, kc_h, adj, W1, E, a)
        out = jax.block_until_ready(out)
        ref = _reference(exercise_h, kc_h, adj, W1, E, a)
        assert out.shape == out_shape
        assert bool(jnp.all(jnp.isfinite(out)))
        # bf16 MXU inputs (f32 accumulation) -> slightly looser tolerance than f32.
        assert bool(jnp.allclose(out, ref, rtol=2e-2, atol=2e-2))

    print("KERNEL_OK")
</pallas_src>

<mosaic_0001>
module attributes {stable_mosaic.version = 11 : i64} {
  func.func @_gat_kernel(%arg0: i32, %arg1: memref<32x128xbf16, #tpu.memory_space<vmem>>, %arg2: memref<32x128xi8, #tpu.memory_space<vmem>>, %arg3: memref<32x1xf32, #tpu.memory_space<vmem>>, %arg4: memref<8x128xf32, #tpu.memory_space<vmem>>, %arg5: memref<128x128xbf16, #tpu.memory_space<vmem>>, %arg6: memref<128x128xbf16, #tpu.memory_space<vmem>>, %arg7: memref<32x128xf32, #tpu.memory_space<vmem>>) attributes {dimension_semantics = [#tpu.dimension_semantics<parallel>], iteration_bounds = array<i64: 1>, scalar_prefetch = 0 : i64, scratch_operands = 0 : i64, tpu.core_type = #tpu.core_type<tc>, window_params = [{transform_indices = @transform_0, window_bounds = array<i64: 32, 128>}, {transform_indices = @transform_1, window_bounds = array<i64: 32, 128>}, {transform_indices = @transform_2, window_bounds = array<i64: 32, 1>}, {pipeline_mode = #tpu.pipeline_mode<synchronous>, transform_indices = @transform_3, window_bounds = array<i64: 8, 128>}, {pipeline_mode = #tpu.pipeline_mode<synchronous>, transform_indices = @transform_4, window_bounds = array<i64: 128, 128>}, {pipeline_mode = #tpu.pipeline_mode<synchronous>, transform_indices = @transform_5, window_bounds = array<i64: 128, 128>}, {transform_indices = @transform_6, window_bounds = array<i64: 32, 128>}]} {
    %c0 = arith.constant 0 : index
    %c0_0 = arith.constant 0 : index
    %0 = vector.load %arg3[%c0, %c0_0] : memref<32x1xf32, #tpu.memory_space<vmem>>, vector<32x1xf32>
    %c0_1 = arith.constant 0 : index
    %c0_2 = arith.constant 0 : index
    %1 = vector.load %arg4[%c0_1, %c0_2] : memref<8x128xf32, #tpu.memory_space<vmem>>, vector<1x128xf32>
    %2 = vector.broadcast %0 : vector<32x1xf32> to vector<32x128xf32>
    %3 = vector.broadcast %1 : vector<1x128xf32> to vector<32x128xf32>
    %4 = arith.addf %2, %3 : vector<32x128xf32>
    %cst = arith.constant 0.000000e+00 : f32
    %5 = vector.broadcast %cst : f32 to vector<32x128xf32>
    %6 = arith.cmpf ogt, %4, %5 : vector<32x128xf32>
    %cst_3 = arith.constant 2.000000e-01 : f32
    %7 = vector.broadcast %cst_3 : f32 to vector<32x128xf32>
    %8 = arith.mulf %7, %4 : vector<32x128xf32>
    %9 = arith.select %6, %4, %8 : vector<32x128xi1>, vector<32x128xf32>
    %c0_4 = arith.constant 0 : index
    %c0_5 = arith.constant 0 : index
    %10 = vector.load %arg2[%c0_4, %c0_5] : memref<32x128xi8, #tpu.memory_space<vmem>>, vector<32x128xi8>
    %11 = arith.extsi %10 : vector<32x128xi8> to vector<32x128xi32>
    %c0_i32 = arith.constant 0 : i32
    %12 = vector.broadcast %c0_i32 : i32 to vector<32x128xi32>
    %13 = arith.cmpi sgt, %11, %12 : vector<32x128xi32>
    %cst_6 = arith.constant -9.000000e+15 : f32
    %14 = vector.broadcast %cst_6 : f32 to vector<32x128xf32>
    %15 = arith.select %13, %9, %14 : vector<32x128xi1>, vector<32x128xf32>
    %cst_7 = arith.constant dense<0xFF800000> : vector<32xf32>
    %16 = vector.multi_reduction <maximumf>, %15, %cst_7 [1] : vector<32x128xf32> to vector<32xf32>
    %17 = vector.shape_cast %16 : vector<32xf32> to vector<32x1xf32>
    %18 = vector.broadcast %17 : vector<32x1xf32> to vector<32x128xf32>
    %19 = arith.subf %15, %18 : vector<32x128xf32>
    %20 = math.exp %19 : vector<32x128xf32>
    %cst_8 = arith.constant dense<0.000000e+00> : vector<32xf32>
    %21 = vector.multi_reduction <add>, %20, %cst_8 [1] : vector<32x128xf32> to vector<32xf32>
    %22 = vector.shape_cast %21 : vector<32xf32> to vector<32x1xf32>
    %23 = tpu.reciprocal %22 {approx = true} : vector<32x1xf32> -> vector<32x1xf32>
    %24 = vector.broadcast %23 : vector<32x1xf32> to vector<32x128xf32>
    %25 = arith.mulf %20, %24 : vector<32x128xf32>
    %26 = arith.truncf %25 : vector<32x128xf32> to vector<32x128xbf16>
    %c0_9 = arith.constant 0 : index
    %c0_10 = arith.constant 0 : index
    %27 = vector.load %arg5[%c0_9, %c0_10] : memref<128x128xbf16, #tpu.memory_space<vmem>>, vector<128x128xbf16>
    %cst_11 = arith.constant dense<0.000000e+00> : vector<32x128xf32>
    %28 = tpu.matmul %26, %27, %cst_11 {dimension_numbers = #tpu.dot_dimension_numbers<[1], [0], [0], [1], [0, 0, 1, 1], [], []>} : vector<32x128xbf16>, vector<128x128xbf16>, vector<32x128xf32> -> vector<32x128xf32>
    %c0_12 = arith.constant 0 : index
    %c0_13 = arith.constant 0 : index
    %29 = vector.load %arg1[%c0_12, %c0_13] : memref<32x128xbf16, #tpu.memory_space<vmem>>, vector<32x128xbf16>
    %c0_14 = arith.constant 0 : index
    %c0_15 = arith.constant 0 : index
    %30 = vector.load %arg6[%c0_14, %c0_15] : memref<128x128xbf16, #tpu.memory_space<vmem>>, vector<128x128xbf16>
    %cst_16 = arith.constant dense<0.000000e+00> : vector<32x128xf32>
    %31 = tpu.matmul %29, %30, %cst_16 {dimension_numbers = #tpu.dot_dimension_numbers<[1], [0], [0], [1], [0, 0, 1, 1], [], []>} : vector<32x128xbf16>, vector<128x128xbf16>, vector<32x128xf32> -> vector<32x128xf32>
    %32 = arith.mulf %28, %31 : vector<32x128xf32>
    %cst_17 = arith.constant 0.000000e+00 : f32
    %33 = vector.broadcast %cst_17 : f32 to vector<32x128xf32>
    %34 = arith.minimumf %32, %33 : vector<32x128xf32>
    %35 = math.exp %34 : vector<32x128xf32>
    %cst_18 = arith.constant 1.000000e+00 : f32
    %36 = vector.broadcast %cst_18 : f32 to vector<32x128xf32>
    %37 = arith.subf %35, %36 : vector<32x128xf32>
    %cst_19 = arith.constant 0.000000e+00 : f32
    %38 = vector.broadcast %cst_19 : f32 to vector<32x128xf32>
    %39 = arith.cmpf ogt, %32, %38 : vector<32x128xf32>
    %40 = arith.select %39, %32, %37 : vector<32x128xi1>, vector<32x128xf32>
    %c0_20 = arith.constant 0 : index
    %c0_21 = arith.constant 0 : index
    %41 = vector.load %arg7[%c0_20, %c0_21] : memref<32x128xf32, #tpu.memory_space<vmem>>, vector<32x128xf32>
    tpu.vector_store %arg7[%c0_20, %c0_21], %40 {strides = array<i32>} : memref<32x128xf32, #tpu.memory_space<vmem>>, vector<32x128xf32>,
    return
  }
  func.func @transform_0(%arg0: i32) -> (i32, i32) {
    %c0_i32 = arith.constant 0 : i32
    %c0_i32_0 = arith.constant 0 : i32
    return %arg0, %c0_i32 : i32, i32
  }
  func.func @transform_1(%arg0: i32) -> (i32, i32) {
    %c0_i32 = arith.constant 0 : i32
    %c0_i32_0 = arith.constant 0 : i32
    return %arg0, %c0_i32 : i32, i32
  }
  func.func @transform_2(%arg0: i32) -> (i32, i32) {
    %c0_i32 = arith.constant 0 : i32
    %c0_i32_0 = arith.constant 0 : i32
    return %arg0, %c0_i32 : i32, i32
  }
  func.func @transform_3(%arg0: i32) -> (i32, i32) {
    %c0_i32 = arith.constant 0 : i32
    %c0_i32_0 = arith.constant 0 : i32
    %c0_i32_1 = arith.constant 0 : i32
    return %c0_i32, %c0_i32_0 : i32, i32
  }
  func.func @transform_4(%arg0: i32) -> (i32, i32) {
    %c0_i32 = arith.constant 0 : i32
    %c0_i32_0 = arith.constant 0 : i32
    %c0_i32_1 = arith.constant 0 : i32
    return %c0_i32, %c0_i32_0 : i32, i32
  }
  func.func @transform_5(%arg0: i32) -> (i32, i32) {
    %c0_i32 = arith.constant 0 : i32
    %c0_i32_0 = arith.constant 0 : i32
    %c0_i32_1 = arith.constant 0 : i32
    return %c0_i32, %c0_i32_0 : i32, i32
  }
  func.func @transform_6(%arg0: i32) -> (i32, i32) {
    %c0_i32 = arith.constant 0 : i32
    %c0_i32_0 = arith.constant 0 : i32
    return %arg0, %c0_i32 : i32, i32
  }
}

</mosaic_0001>

<llo_original>
// kernel: exercise_kc_gat.1
$region0: #{exercise_kc_gat.1}
  #allocation0 [shape = 'u32[]', space=smem, size = 0x4, offset = 0x4, fixed_abs, tag = 'smem constant byte address 0x4 - core index']
  #allocation1 [shape = 'u32[144,128]{1,0:T(1,128)}', space=vmem, size = 0x12000, scoped, tag = 'internal scratch']
  %s0 = inlined_call_operand.vmem [shape: bf16[32,128], index: 0, kind: input, shape index: {}]
  %s1 = inlined_call_operand.vmem [shape: s8[32,128], index: 1, kind: input, shape index: {}]
  %s2 = inlined_call_operand.vmem [shape: f32[32,1], index: 2, kind: input, shape index: {}]
  %s3 = inlined_call_operand.vmem [shape: f32[8,128], index: 3, kind: input, shape index: {}]
  %s4 = inlined_call_operand.vmem [shape: bf16[128,128], index: 4, kind: input, shape index: {}]
  %s5 = inlined_call_operand.vmem [shape: bf16[128,128], index: 5, kind: input, shape index: {}]
  %s6 = inlined_call_operand.vmem [shape: f32[32,128], index: 6, kind: output, shape index: {}]
  %s7 = sld [smem:[#allocation0]]
  $region34: #{exercise_kc_gat.1} parent=0
    _
  %s9 = ssub.s32 1, %s7
  %s10 = scalar_select 0, %s9, %s7
  // Predicated region
  $region2: #{exercise_kc_gat.1} parent=0 // pred_check
    _
  $region3: #{exercise_kc_gat.1} parent=0 // pred_check_branch
    %12 = sbr.rel (0) target = $region5
  $region4: #{exercise_kc_gat.1} parent=0 // pred_region
    _
  $region5: #{exercise_kc_gat.1} parent=0 // pred_fallthru
    _
  // Predicated region
  $region6: #{exercise_kc_gat.1} parent=0 // pred_check
    _
  $region7: #{exercise_kc_gat.1} parent=0 // pred_check_branch
    %14 = sbr.rel (0) target = $region9
  $region8: #{exercise_kc_gat.1} parent=0 // pred_region
    _
  $region9: #{exercise_kc_gat.1} parent=0 // pred_fallthru
    _
  // Predicated region
  $region10: #{exercise_kc_gat.1} parent=0 // pred_check
    _
  $region11: #{exercise_kc_gat.1} parent=0 // pred_check_branch
    %16 = sbr.rel (0) target = $region13
  $region12: #{exercise_kc_gat.1} parent=0 // pred_region
    _
  $region13: #{exercise_kc_gat.1} parent=0 // pred_fallthru
    _
  // Predicated region
  $region14: #{exercise_kc_gat.1} parent=0 // pred_check
    _
  $region15: #{exercise_kc_gat.1} parent=0 // pred_check_branch
    %18 = sbr.rel (0) target = $region17
  $region16: #{exercise_kc_gat.1} parent=0 // pred_region
    _
  $region17: #{exercise_kc_gat.1} parent=0 // pred_fallthru
    _
  // Predicated region
  $region18: #{exercise_kc_gat.1} parent=0 // pred_check
    _
  $region19: #{exercise_kc_gat.1} parent=0 // pred_check_branch
    %20 = sbr.rel (0) target = $region21
  $region20: #{exercise_kc_gat.1} parent=0 // pred_region
    _
  $region21: #{exercise_kc_gat.1} parent=0 // pred_fallthru
    _
  // Predicated region
  $region22: #{exercise_kc_gat.1} parent=0 // pred_check
    _
  $region23: #{exercise_kc_gat.1} parent=0 // pred_check_branch
    %22 = sbr.rel (0) target = $region25
  $region24: #{exercise_kc_gat.1} parent=0 // pred_region
    _
  $region25: #{exercise_kc_gat.1} parent=0 // pred_fallthru
    _
  %v24 = vld [vmem:[%s2] sm:$0xff]
  %v25 = vld [vmem:[%s2 + $0x8] sm:$0xff]
  %v26 = vld [vmem:[%s2 + $0x10] sm:$0xff]
  %v27 = vld [vmem:[%s2 + $0x18] sm:$0xff]
  %v28 = vld [vmem:[%s3] sm:$0x1]
  %30 = vset.pattern.permute.xlu0 0
  %31 = vperm.xlu0 %30, %v24
  %v32 = vpop.permute.xlu0 %31
  %35 = vset.pattern.permute.xlu0 0
  %36 = vperm.xlu0 %35, %v25
  %v37 = vpop.permute.xlu0 %36
  %40 = vset.pattern.permute.xlu0 0
  %41 = vperm.xlu0 %40, %v26
  %v42 = vpop.permute.xlu0 %41
  %45 = vset.pattern.permute.xlu0 0
  %46 = vperm.xlu0 %45, %v27
  %v47 = vpop.permute.xlu0 %46
  %v49 = vlaneseq
  %v50 = vshrl.u32 %v49, 7
  %v51 = vsub.s32 0, %v50
  %v52 = vrot.slane %v28, %v51
  %v53 = vadd.f32 %v32, %v52
  %v54 = vadd.f32 %v37, %v52
  %v55 = vadd.f32 %v42, %v52
  %v56 = vadd.f32 %v47, %v52
  %vm57 = vcmp.gt.f32.partialorder %v53, 0.0
  %vm58 = vcmp.gt.f32.partialorder %v54, 0.0
  %vm59 = vcmp.gt.f32.partialorder %v55, 0.0
  %vm60 = vcmp.gt.f32.partialorder %v56, 0.0
  %v61 = vmul.f32 %v53, 0.2
  %v62 = vmul.f32 %v54, 0.2
  %v63 = vmul.f32 %v55, 0.2
  %v64 = vmul.f32 %v56, 0.2
  %v65 = vsel %vm57, %v53, %v61
  %v66 = vsel %vm58, %v54, %v62
  %v67 = vsel %vm59, %v55, %v63
  %v68 = vsel %vm60, %v56, %v64
  %v69 = vld [vmem:[%s1] sm:$0xff]
  %v70 = vunpack.c.0.s8 %v69
  %v71 = vunpack.c.1.s8 %v69
  %v72 = vunpack.c.2.s8 %v69
  %v73 = vunpack.c.3.s8 %v69
  %vm74 = vcmp.gt.s32.totalorder %v70, 0
  %vm75 = vcmp.gt.s32.totalorder %v71, 0
  %vm76 = vcmp.gt.s32.totalorder %v72, 0
  %vm77 = vcmp.gt.s32.totalorder %v73, 0
  %v78 = vsel %vm74, %v65, -9e+15
  %v79 = vsel %vm75, %v66, -9e+15
  %v80 = vsel %vm76, %v67, -9e+15
  %v81 = vsel %vm77, %v68, -9e+15
  %82 = vmax.xlane.f32.xlu0 %v78
  %v83 = vpop.xlane.xlu0 %82
  %84 = vmax.xlane.f32.xlu0 %v79
  %v85 = vpop.xlane.xlu0 %84
  %86 = vmax.xlane.f32.xlu0 %v80
  %v87 = vpop.xlane.xlu0 %86
  %88 = vmax.xlane.f32.xlu0 %v81
  %v89 = vpop.xlane.xlu0 %88
  %v90 = vsub.f32 %v78, %v83
  %v91 = vsub.f32 %v79, %v85
  %v92 = vsub.f32 %v80, %v87
  %v93 = vsub.f32 %v81, %v89
  %v94 = vmul.f32 %v90, 1.442695
  %v95 = vpow.pop %v94
  %v96 = vmul.f32 %v91, 1.442695
  %v97 = vpow.pop %v96
  %v98 = vmul.f32 %v92, 1.442695
  %v99 = vpow.pop %v98
  %v100 = vmul.f32 %v93, 1.442695
  %v101 = vpow.pop %v100
  %102 = vadd.xlane.f32.xlu0 %v95
  %v103 = vpop.xlane.xlu0 %102
  %104 = vadd.xlane.f32.xlu0 %v97
  %v105 = vpop.xlane.xlu0 %104
  %106 = vadd.xlane.f32.xlu0 %v99
  %v107 = vpop.xlane.xlu0 %106
  %108 = vadd.xlane.f32.xlu0 %v101
  %v109 = vpop.xlane.xlu0 %108
  %v110 = vrcp.pop %v103
  %v111 = vrcp.pop %v105
  %v112 = vrcp.pop %v107
  %v113 = vrcp.pop %v109
  %v114 = vmul.f32 %v95, %v110
  %v115 = vmul.f32 %v97, %v111
  %v116 = vmul.f32 %v99, %v112
  %v117 = vmul.f32 %v101, %v113
  %v118 = vpack.c.bf16 %v115, %v114
  %v119 = vpack.c.bf16 %v117, %v116
  %v120 = vld [vmem:[%s4] sm:$0xf]
  %v121 = vld [vmem:[%s4 + $0x4] sm:$0xf]
  %v122 = vld [vmem:[%s4 + $0x8] sm:$0xf]
  %v123 = vld [vmem:[%s4 + $0xc] sm:$0xf]
  %v124 = vld [vmem:[%s4 + $0x10] sm:$0xf]
  %v125 = vld [vmem:[%s4 + $0x14] sm:$0xf]
  %v126 = vld [vmem:[%s4 + $0x18] sm:$0xf]
  %v127 = vld [vmem:[%s4 + $0x1c] sm:$0xf]
  %v128 = vld [vmem:[%s4 + $0x20] sm:$0xf]
  %v129 = vld [vmem:[%s4 + $0x24] sm:$0xf]
  %v130 = vld [vmem:[%s4 + $0x28] sm:$0xf]
  %v131 = vld [vmem:[%s4 + $0x2c] sm:$0xf]
  %v132 = vld [vmem:[%s4 + $0x30] sm:$0xf]
  %v133 = vld [vmem:[%s4 + $0x34] sm:$0xf]
  %v134 = vld [vmem:[%s4 + $0x38] sm:$0xf]
  %v135 = vld [vmem:[%s4 + $0x3c] sm:$0xf]
  %v152 = vunpack.c.l.b16 %v120
  %v153 = vunpack.c.l.b16 %v121
  %v154 = vunpack.c.l.b16 %v122
  %v155 = vunpack.c.l.b16 %v123
  %v156 = vunpack.c.l.b16 %v124
  %v157 = vunpack.c.l.b16 %v125
  %v158 = vunpack.c.l.b16 %v126
  %v159 = vunpack.c.l.b16 %v127
  %v160 = vunpack.c.l.b16 %v128
  %v161 = vunpack.c.l.b16 %v129
  %v162 = vunpack.c.l.b16 %v130
  %v163 = vunpack.c.l.b16 %v131
  %v164 = vunpack.c.l.b16 %v132
  %v165 = vunpack.c.l.b16 %v133
  %v166 = vunpack.c.l.b16 %v134
  %v167 = vunpack.c.l.b16 %v135
  %v168 = vpack.c.b16 %v153, %v152
  %v169 = vpack.c.b16 %v155, %v154
  %v170 = vpack.c.b16 %v157, %v156
  %v171 = vpack.c.b16 %v159, %v158
  %v172 = vpack.c.b16 %v161, %v160
  %v173 = vpack.c.b16 %v163, %v162
  %v174 = vpack.c.b16 %v165, %v164
  %v175 = vpack.c.b16 %v167, %v166
  %184 = vmatprep.subr.bf16.mxu0 0
  %185 = vmatpush1.bf16.msra.mxu0 %v168
  %186 = vmatprep.subr.bf16.mxu0 0
  %187 = vmatpush1.bf16.msra.mxu0 %v169
  %188 = vmatprep.subr.bf16.mxu0 0
  %189 = vmatpush1.bf16.msra.mxu0 %v170
  %190 = vmatprep.subr.bf16.mxu0 0
  %191 = vmatpush1.bf16.msra.mxu0 %v171
  %192 = vmatprep.subr.bf16.mxu0 0
  %193 = vmatpush1.bf16.msra.mxu0 %v172
  %194 = vmatprep.subr.bf16.mxu0 0
  %195 = vmatpush1.bf16.msra.mxu0 %v173
  %196 = vmatprep.subr.bf16.mxu0 0
  %197 = vmatpush1.bf16.msra.mxu0 %v174
  %198 = vmatprep.subr.bf16.mxu0 0
  %199 = vmatpush1.bf16.msra.mxu0 %v175
  %200 = vmatprep.subr.bf16.mxu0 0
  %201 = vmatpush1.bf16.msra.mxu0 0
  %202 = vmatprep.subr.bf16.mxu0 0
  %203 = vmatpush1.bf16.msra.mxu0 0
  %204 = vmatprep.subr.bf16.mxu0 0
  %205 = vmatpush1.bf16.msra.mxu0 0
  %206 = vmatprep.subr.bf16.mxu0 0
  %207 = vmatpush1.bf16.msra.mxu0 0
  %208 = vmatprep.subr.bf16.mxu0 0
  %209 = vmatpush1.bf16.msra.mxu0 0
  %210 = vmatprep.subr.bf16.mxu0 0
  %211 = vmatpush1.bf16.msra.mxu0 0
  %212 = vmatprep.subr.bf16.mxu0 0
  %213 = vmatpush1.bf16.msra.mxu0 0
  %214 = vmatprep.subr.bf16.mxu0 0
  %215 = vmatpush1.bf16.msra.mxu0 0
  %216 = vmatprep.mubr.bf16.mxu0 0
  %217 = vmatmul.mubr.bf16.gmra.mrb[0].mxu0 %v118
  %v218 = vpop.f32.mrb[0].mxu0
  %v219 = vadd.f32 0.0, %v218
  %v220 = vpop.f32.mrb[0].mxu0
  %v221 = vpop.f32.mrb[0].mxu0
  %v222 = vadd.f32 0.0, %v221
  %v223 = vpop.f32.mrb[0].mxu0
  %224 = vmatprep.mubr.bf16.mxu0 0
  %225 = vmatmul.mubr.bf16.gmra.mrb[0].mxu0 %v119
  %v226 = vpop.f32.mrb[0].mxu0
  %v227 = vadd.f32 0.0, %v226
  %v228 = vpop.f32.mrb[0].mxu0
  %v229 = vpop.f32.mrb[0].mxu0
  %v230 = vadd.f32 0.0, %v229
  %v231 = vpop.f32.mrb[0].mxu0
  %232 = vdwg.mxu0
  %v233 = vld [vmem:[%s0] sm:$0xf]
  %v234 = vld [vmem:[%s0 + $0x4] sm:$0xf]
  %v235 = vld [vmem:[%s0 + $0x8] sm:$0xf]
  %v236 = vld [vmem:[%s0 + $0xc] sm:$0xf]
  %v237 = vld [vmem:[%s5] sm:$0xf]
  %v238 = vld [vmem:[%s5 + $0x4] sm:$0xf]
  %v239 = vld [vmem:[%s5 + $0x8] sm:$0xf]
  %v240 = vld [vmem:[%s5 + $0xc] sm:$0xf]
  %v241 = vld [vmem:[%s5 + $0x10] sm:$0xf]
  %v242 = vld [vmem:[%s5 + $0x14] sm:$0xf]
  %v243 = vld [vmem:[%s5 + $0x18] sm:$0xf]
  %v244 = vld [vmem:[%s5 + $0x1c] sm:$0xf]
  %v245 = vld [vmem:[%s5 + $0x20] sm:$0xf]
  %v246 = vld [vmem:[%s5 + $0x24] sm:$0xf]
  %v247 = vld [vmem:[%s5 + $0x28] sm:$0xf]
  %v248 = vld [vmem:[%s5 + $0x2c] sm:$0xf]
  %v249 = vld [vmem:[%s5 + $0x30] sm:$0xf]
  %v250 = vld [vmem:[%s5 + $0x34] sm:$0xf]
  %v251 = vld [vmem:[%s5 + $0x38] sm:$0xf]
  %v252 = vld [vmem:[%s5 + $0x3c] sm:$0xf]
  %v257 = vunpack.c.l.b16 %v233
  %v258 = vunpack.c.l.b16 %v234
  %v259 = vunpack.c.l.b16 %v235
  %v260 = vunpack.c.l.b16 %v236
  %v261 = vpack.c.b16 %v258, %v257
  %v262 = vpack.c.b16 %v260, %v259
  %v281 = vunpack.c.l.b16 %v237
  %v282 = vunpack.c.l.b16 %v238
  %v283 = vunpack.c.l.b16 %v239
  %v284 = vunpack.c.l.b16 %v240
  %v285 = vunpack.c.l.b16 %v241
  %v286 = vunpack.c.l.b16 %v242
  %v287 = vunpack.c.l.b16 %v243
  %v288 = vunpack.c.l.b16 %v244
  %v289 = vunpack.c.l.b16 %v245
  %v290 = vunpack.c.l.b16 %v246
  %v291 = vunpack.c.l.b16 %v247
  %v292 = vunpack.c.l.b16 %v248
  %v293 = vunpack.c.l.b16 %v249
  %v294 = vunpack.c.l.b16 %v250
  %v295 = vunpack.c.l.b16 %v251
  %v296 = vunpack.c.l.b16 %v252
  %v297 = vpack.c.b16 %v282, %v281
  %v298 = vpack.c.b16 %v284, %v283
  %v299 = vpack.c.b16 %v286, %v285
  %v300 = vpack.c.b16 %v288, %v287
  %v301 = vpack.c.b16 %v290, %v289
  %v302 = vpack.c.b16 %v292, %v291
  %v303 = vpack.c.b16 %v294, %v293
  %v304 = vpack.c.b16 %v296, %v295
  %313 = vmatprep.subr.bf16.mxu0 0
  %314 = vmatpush1.bf16.msra.mxu0 %v297
  %315 = vmatprep.subr.bf16.mxu0 0
  %316 = vmatpush1.bf16.msra.mxu0 %v298
  %317 = vmatprep.subr.bf16.mxu0 0
  %318 = vmatpush1.bf16.msra.mxu0 %v299
  %319 = vmatprep.subr.bf16.mxu0 0
  %320 = vmatpush1.bf16.msra.mxu0 %v300
  %321 = vmatprep.subr.bf16.mxu0 0
  %322 = vmatpush1.bf16.msra.mxu0 %v301
  %323 = vmatprep.subr.bf16.mxu0 0
  %324 = vmatpush1.bf16.msra.mxu0 %v302
  %325 = vmatprep.subr.bf16.mxu0 0
  %326 = vmatpush1.bf16.msra.mxu0 %v303
  %327 = vmatprep.subr.bf16.mxu0 0
  %328 = vmatpush1.bf16.msra.mxu0 %v304
  %329 = vmatprep.subr.bf16.mxu0 0
  %330 = vmatpush1.bf16.msra.mxu0 0
  %331 = vmatprep.subr.bf16.mxu0 0
  %332 = vmatpush1.bf16.msra.mxu0 0
  %333 = vmatprep.subr.bf16.mxu0 0
  %334 = vmatpush1.bf16.msra.mxu0 0
  %335 = vmatprep.subr.bf16.mxu0 0
  %336 = vmatpush1.bf16.msra.mxu0 0
  %337 = vmatprep.subr.bf16.mxu0 0
  %338 = vmatpush1.bf16.msra.mxu0 0
  %339 = vmatprep.subr.bf16.mxu0 0
  %340 = vmatpush1.bf16.msra.mxu0 0
  %341 = vmatprep.subr.bf16.mxu0 0
  %342 = vmatpush1.bf16.msra.mxu0 0
  %343 = vmatprep.subr.bf16.mxu0 0
  %344 = vmatpush1.bf16.msra.mxu0 0
  %345 = vmatprep.mubr.bf16.mxu0 0
  %346 = vmatmul.mubr.bf16.gmra.mrb[0].mxu0 %v261
  %v347 = vpop.f32.mrb[0].mxu0
  %v348 = vadd.f32 0.0, %v347
  %v349 = vpop.f32.mrb[0].mxu0
  %v350 = vpop.f32.mrb[0].mxu0
  %v351 = vadd.f32 0.0, %v350
  %v352 = vpop.f32.mrb[0].mxu0
  %353 = vmatprep.mubr.bf16.mxu0 0
  %354 = vmatmul.mubr.bf16.gmra.mrb[0].mxu0 %v262
  %v355 = vpop.f32.mrb[0].mxu0
  %v356 = vadd.f32 0.0, %v355
  %v357 = vpop.f32.mrb[0].mxu0
  %v358 = vpop.f32.mrb[0].mxu0
  %v359 = vadd.f32 0.0, %v358
  %v360 = vpop.f32.mrb[0].mxu0
  %361 = vdwg.mxu0
  %v362 = vmul.f32 %v219, %v348
  %v363 = vmul.f32 %v222, %v351
  %v364 = vmul.f32 %v227, %v356
  %v365 = vmul.f32 %v230, %v359
  %v366 = vmin.f32 %v362, 0.0
  %v367 = vmin.f32 %v363, 0.0
  %v368 = vmin.f32 %v364, 0.0
  %v369 = vmin.f32 %v365, 0.0
  %v370 = vmul.f32 %v366, 1.442695
  %v371 = vpow.pop %v370
  %v372 = vmul.f32 %v367, 1.442695
  %v373 = vpow.pop %v372
  %v374 = vmul.f32 %v368, 1.442695
  %v375 = vpow.pop %v374
  %v376 = vmul.f32 %v369, 1.442695
  %v377 = vpow.pop %v376
  %v378 = vsub.f32 %v371, 1.0
  %v379 = vsub.f32 %v373, 1.0
  %v380 = vsub.f32 %v375, 1.0
  %v381 = vsub.f32 %v377, 1.0
  %vm382 = vcmp.gt.f32.partialorder %v362, 0.0
  %vm383 = vcmp.gt.f32.partialorder %v363, 0.0
  %vm384 = vcmp.gt.f32.partialorder %v364, 0.0
  %vm385 = vcmp.gt.f32.partialorder %v365, 0.0
  %v386 = vsel %vm382, %v362, %v378
  %v387 = vsel %vm383, %v363, %v379
  %v388 = vsel %vm384, %v364, %v380
  %v389 = vsel %vm385, %v365, %v381
  %390 = vst [vmem:[%s6] sm:$0xff] %v386
  %391 = vst [vmem:[%s6 + $0x8] sm:$0xff] %v387
  %392 = vst [vmem:[%s6 + $0x10] sm:$0xff] %v388
  %393 = vst [vmem:[%s6 + $0x18] sm:$0xff] %v389
  // Predicated region
  $region26: #{exercise_kc_gat.1} parent=0 // pred_check
    _
  $region27: #{exercise_kc_gat.1} parent=0 // pred_check_branch
    %395 = sbr.rel (0) target = $region29
  $region28: #{exercise_kc_gat.1} parent=0 // pred_region
    _
  $region29: #{exercise_kc_gat.1} parent=0 // pred_fallthru
    _
  // Predicated region
  $region30: #{exercise_kc_gat.1} parent=0 // pred_check
    _
  $region31: #{exercise_kc_gat.1} parent=0 // pred_check_branch
    %397 = sbr.rel (0) target = $region33
  $region32: #{exercise_kc_gat.1} parent=0 // pred_region
    _
  $region33: #{exercise_kc_gat.1} parent=0 // pred_fallthru
    _

</llo_original>
